<compile_context>
chip_gen: v7x
topology: tpu7x:2x2x1
jax: 0.10.0
libtpu: 0.0.40
codegen_flags: <defaults>
</compile_context>

<pallas_src>
import jax
import jax.numpy as jnp
from jax.experimental import pallas as pl
from jax.experimental.pallas import tpu as pltpu


def _round_up(n, m):
    return ((n + m - 1) // m) * m


def dnn_kernel(x_ref, w1_ref, b1_ref, w2_ref, b2_ref, o_ref):
    # fc1: bf16 x @ bf16 w1 -> f32 accumulation on the MXU.
    h = jnp.dot(x_ref[...], w1_ref[...], preferred_element_type=jnp.float32)
    # Bias add + sigmoid in f32 (single broadcast per tile).
    h = jax.nn.sigmoid(h + b1_ref[...])
    # fc1_drop: nn.Dropout(0.25) is identity in eval mode.
    # TODO(synk): training-mode dropout (pltpu.prng_random_bits mask + 1/(1-p) scale) not wired in.
    # fc2 + sigmoid (K=10, C=4 -> negligible; kept in f32).
    y = jnp.dot(h, w2_ref[...], preferred_element_type=jnp.float32)
    o_ref[...] = jax.nn.sigmoid(y + b2_ref[...]).astype(o_ref.dtype)


def dnn_forward(x, w1, b1, w2, b2, *, tile_b=4096):
    """x: [B, in_features]; w1: [in, 10]; b1: [1, 10]; w2: [10, C]; b2: [1, C]."""
    B, K = x.shape
    H = w1.shape[1]
    C = w2.shape[1]

    # Tile size: multiple of 8 sublanes, no larger than the (padded) batch.
    tile_b = min(tile_b, _round_up(B, 8))
    B_pad = _round_up(B, tile_b)
    num_tiles = B_pad // tile_b

    # Pad the batch so every grid step sees a full tile (padded rows sliced off below).
    if B_pad != B:
        x = jnp.pad(x, ((0, B_pad - B), (0, 0)))

    # Halve HBM bytes for the dominant input stream; MXU takes bf16 natively with
    # f32 accumulation, so no accuracy loss in the matmul.
    x_bf16 = x.astype(jnp.bfloat16)
    w1_bf16 = w1.astype(jnp.bfloat16)

    out_padded = pl.pallas_call(
        dnn_kernel,
        out_shape=jax.ShapeDtypeStruct((B_pad, C), jnp.float32),
        grid=(num_tiles,),
        in_specs=[
            pl.BlockSpec((tile_b, K), lambda i: (i, 0)),   # x: streamed per tile
            pl.BlockSpec((K, H), lambda i: (0, 0)),        # w1: VMEM-resident
            pl.BlockSpec((1, H), lambda i: (0, 0)),        # b1: VMEM-resident
            pl.BlockSpec((H, C), lambda i: (0, 0)),        # w2: VMEM-resident
            pl.BlockSpec((1, C), lambda i: (0, 0)),        # b2: VMEM-resident
        ],
        out_specs=pl.BlockSpec((tile_b, C), lambda i: (i, 0)),
        compiler_params=pltpu.CompilerParams(
            dimension_semantics=("parallel",),
        ),
    )(x_bf16, w1_bf16, b1, w2, b2)

    return out_padded[:B]


def init_params(key, in_channels, num_classes, hidden=10):
    """Deterministic init mimicking PyTorch nn.Linear default (uniform ±1/sqrt(fan_in))."""
    k1, k2, k3, k4 = jax.random.split(key, 4)
    bound1 = 1.0 / (in_channels ** 0.5)
    bound2 = 1.0 / (hidden ** 0.5)
    # Stored directly in [in, out] layout (transpose of PyTorch's [out, in]).
    w1 = jax.random.uniform(k1, (in_channels, hidden), jnp.float32, -bound1, bound1)
    b1 = jax.random.uniform(k2, (1, hidden), jnp.float32, -bound1, bound1)
    w2 = jax.random.uniform(k3, (hidden, num_classes), jnp.float32, -bound2, bound2)
    b2 = jax.random.uniform(k4, (1, num_classes), jnp.float32, -bound2, bound2)
    return w1, b1, w2, b2


if __name__ == "__main__":
    in_channels = 32
    num_classes = 4
    batch = 2

    key = jax.random.PRNGKey(0)
    kx, kp = jax.random.split(key)
    x = jax.random.normal(kx, (batch, in_channels), jnp.float32)
    w1, b1, w2, b2 = init_params(kp, in_channels, num_classes)

    out = dnn_forward(x, w1, b1, w2, b2)
    jax.block_until_ready(out)

    # Reference check in plain JAX with the same bf16 input/weight quantization
    # (eval-mode dropout == identity).
    x_q = x.astype(jnp.bfloat16).astype(jnp.float32)
    w1_q = w1.astype(jnp.bfloat16).astype(jnp.float32)
    ref = jax.nn.sigmoid(jax.nn.sigmoid(x_q @ w1_q + b1) @ w2 + b2)

    assert out.shape == (batch, num_classes)
    assert jnp.allclose(out, ref, atol=2e-3), "mismatch vs reference"

    print("KERNEL_OK")
</pallas_src>

<mosaic_0001>
module attributes {stable_mosaic.version = 11 : i64} {
  func.func @dnn_kernel(%arg0: i32, %arg1: memref<8x32xbf16, #tpu.memory_space<vmem>>, %arg2: memref<32x10xbf16, #tpu.memory_space<vmem>>, %arg3: memref<1x10xf32, #tpu.memory_space<vmem>>, %arg4: memref<10x4xf32, #tpu.memory_space<vmem>>, %arg5: memref<1x4xf32, #tpu.memory_space<vmem>>, %arg6: memref<8x4xf32, #tpu.memory_space<vmem>>) attributes {dimension_semantics = [#tpu.dimension_semantics<parallel>], iteration_bounds = array<i64: 1>, scalar_prefetch = 0 : i64, scratch_operands = 0 : i64, tpu.core_type = #tpu.core_type<tc>, window_params = [{transform_indices = @transform_0, window_bounds = array<i64: 8, 32>}, {pipeline_mode = #tpu.pipeline_mode<synchronous>, transform_indices = @transform_1, window_bounds = array<i64: 32, 10>}, {pipeline_mode = #tpu.pipeline_mode<synchronous>, transform_indices = @transform_2, window_bounds = array<i64: 1, 10>}, {pipeline_mode = #tpu.pipeline_mode<synchronous>, transform_indices = @transform_3, window_bounds = array<i64: 10, 4>}, {pipeline_mode = #tpu.pipeline_mode<synchronous>, transform_indices = @transform_4, window_bounds = array<i64: 1, 4>}, {transform_indices = @transform_5, window_bounds = array<i64: 8, 4>}]} {
    %c0 = arith.constant 0 : index
    %c0_0 = arith.constant 0 : index
    %0 = vector.load %arg1[%c0, %c0_0] : memref<8x32xbf16, #tpu.memory_space<vmem>>, vector<8x32xbf16>
    %c0_1 = arith.constant 0 : index
    %c0_2 = arith.constant 0 : index
    %1 = vector.load %arg2[%c0_1, %c0_2] : memref<32x10xbf16, #tpu.memory_space<vmem>>, vector<32x10xbf16>
    %cst = arith.constant dense<0.000000e+00> : vector<8x10xf32>
    %2 = tpu.matmul %0, %1, %cst {dimension_numbers = #tpu.dot_dimension_numbers<[1], [0], [0], [1], [0, 0, 1, 1], [], []>} : vector<8x32xbf16>, vector<32x10xbf16>, vector<8x10xf32> -> vector<8x10xf32>
    %c0_3 = arith.constant 0 : index
    %c0_4 = arith.constant 0 : index
    %3 = vector.load %arg3[%c0_3, %c0_4] : memref<1x10xf32, #tpu.memory_space<vmem>>, vector<1x10xf32>
    %4 = vector.broadcast %3 : vector<1x10xf32> to vector<8x10xf32>
    %5 = arith.addf %2, %4 : vector<8x10xf32>
    %6 = arith.negf %5 : vector<8x10xf32>
    %7 = math.exp %6 : vector<8x10xf32>
    %cst_5 = arith.constant 1.000000e+00 : f32
    %8 = vector.broadcast %cst_5 : f32 to vector<8x10xf32>
    %9 = arith.addf %8, %7 : vector<8x10xf32>
    %10 = arith.divf %8, %9 : vector<8x10xf32>
    %c0_6 = arith.constant 0 : index
    %c0_7 = arith.constant 0 : index
    %11 = vector.load %arg4[%c0_6, %c0_7] : memref<10x4xf32, #tpu.memory_space<vmem>>, vector<10x4xf32>
    %cst_8 = arith.constant dense<0.000000e+00> : vector<8x4xf32>
    %12 = tpu.matmul %10, %11, %cst_8 {dimension_numbers = #tpu.dot_dimension_numbers<[1], [0], [0], [1], [0, 0, 1, 1], [], []>} : vector<8x10xf32>, vector<10x4xf32>, vector<8x4xf32> -> vector<8x4xf32>
    %c0_9 = arith.constant 0 : index
    %c0_10 = arith.constant 0 : index
    %13 = vector.load %arg5[%c0_9, %c0_10] : memref<1x4xf32, #tpu.memory_space<vmem>>, vector<1x4xf32>
    %14 = vector.broadcast %13 : vector<1x4xf32> to vector<8x4xf32>
    %15 = arith.addf %12, %14 : vector<8x4xf32>
    %16 = arith.negf %15 : vector<8x4xf32>
    %17 = math.exp %16 : vector<8x4xf32>
    %cst_11 = arith.constant 1.000000e+00 : f32
    %18 = vector.broadcast %cst_11 : f32 to vector<8x4xf32>
    %19 = arith.addf %18, %17 : vector<8x4xf32>
    %20 = arith.divf %18, %19 : vector<8x4xf32>
    %c0_12 = arith.constant 0 : index
    %c0_13 = arith.constant 0 : index
    %21 = vector.load %arg6[%c0_12, %c0_13] : memref<8x4xf32, #tpu.memory_space<vmem>>, vector<8x4xf32>
    tpu.vector_store %arg6[%c0_12, %c0_13], %20 {strides = array<i32>} : memref<8x4xf32, #tpu.memory_space<vmem>>, vector<8x4xf32>,
    return
  }
  func.func @transform_0(%arg0: i32) -> (i32, i32) {
    %c0_i32 = arith.constant 0 : i32
    %c0_i32_0 = arith.constant 0 : i32
    return %arg0, %c0_i32 : i32, i32
  }
  func.func @transform_1(%arg0: i32) -> (i32, i32) {
    %c0_i32 = arith.constant 0 : i32
    %c0_i32_0 = arith.constant 0 : i32
    %c0_i32_1 = arith.constant 0 : i32
    return %c0_i32, %c0_i32_0 : i32, i32
  }
  func.func @transform_2(%arg0: i32) -> (i32, i32) {
    %c0_i32 = arith.constant 0 : i32
    %c0_i32_0 = arith.constant 0 : i32
    %c0_i32_1 = arith.constant 0 : i32
    return %c0_i32, %c0_i32_0 : i32, i32
  }
  func.func @transform_3(%arg0: i32) -> (i32, i32) {
    %c0_i32 = arith.constant 0 : i32
    %c0_i32_0 = arith.constant 0 : i32
    %c0_i32_1 = arith.constant 0 : i32
    return %c0_i32, %c0_i32_0 : i32, i32
  }
  func.func @transform_4(%arg0: i32) -> (i32, i32) {
    %c0_i32 = arith.constant 0 : i32
    %c0_i32_0 = arith.constant 0 : i32
    %c0_i32_1 = arith.constant 0 : i32
    return %c0_i32, %c0_i32_0 : i32, i32
  }
  func.func @transform_5(%arg0: i32) -> (i32, i32) {
    %c0_i32 = arith.constant 0 : i32
    %c0_i32_0 = arith.constant 0 : i32
    return %arg0, %c0_i32 : i32, i32
  }
}

</mosaic_0001>

<llo_original>
// kernel: tpu_custom_call.1
$region0: #{tpu_custom_call.1}
  #allocation0 [shape = 'u32[]', space=smem, size = 0x4, offset = 0x4, fixed_abs, tag = 'smem constant byte address 0x4 - core index']
  #allocation1 [shape = 'u32[144,128]{1,0:T(1,128)}', space=vmem, size = 0x12000, scoped, tag = 'internal scratch']
  %s0 = inlined_call_operand.vmem [shape: bf16[8,32], index: 0, kind: input, shape index: {}]
  %s1 = inlined_call_operand.vmem [shape: bf16[32,10], index: 1, kind: input, shape index: {}]
  %s2 = inlined_call_operand.vmem [shape: f32[1,10], index: 2, kind: input, shape index: {}]
  %s3 = inlined_call_operand.vmem [shape: f32[10,4], index: 3, kind: input, shape index: {}]
  %s4 = inlined_call_operand.vmem [shape: f32[1,4], index: 4, kind: input, shape index: {}]
  %s5 = inlined_call_operand.vmem [shape: f32[8,4], index: 5, kind: output, shape index: {}]
  %s6 = sld [smem:[#allocation0]]
  $region30: #{tpu_custom_call.1} parent=0
    _
  %s8 = ssub.s32 1, %s6
  %s9 = scalar_select 0, %s8, %s6
  // Predicated region
  $region2: #{tpu_custom_call.1} parent=0 // pred_check
    _
  $region3: #{tpu_custom_call.1} parent=0 // pred_check_branch
    %11 = sbr.rel (0) target = $region5
  $region4: #{tpu_custom_call.1} parent=0 // pred_region
    _
  $region5: #{tpu_custom_call.1} parent=0 // pred_fallthru
    _
  // Predicated region
  $region6: #{tpu_custom_call.1} parent=0 // pred_check
    _
  $region7: #{tpu_custom_call.1} parent=0 // pred_check_branch
    %13 = sbr.rel (0) target = $region9
  $region8: #{tpu_custom_call.1} parent=0 // pred_region
    _
  $region9: #{tpu_custom_call.1} parent=0 // pred_fallthru
    _
  // Predicated region
  $region10: #{tpu_custom_call.1} parent=0 // pred_check
    _
  $region11: #{tpu_custom_call.1} parent=0 // pred_check_branch
    %15 = sbr.rel (0) target = $region13
  $region12: #{tpu_custom_call.1} parent=0 // pred_region
    _
  $region13: #{tpu_custom_call.1} parent=0 // pred_fallthru
    _
  // Predicated region
  $region14: #{tpu_custom_call.1} parent=0 // pred_check
    _
  $region15: #{tpu_custom_call.1} parent=0 // pred_check_branch
    %17 = sbr.rel (0) target = $region17
  $region16: #{tpu_custom_call.1} parent=0 // pred_region
    _
  $region17: #{tpu_custom_call.1} parent=0 // pred_fallthru
    _
  // Predicated region
  $region18: #{tpu_custom_call.1} parent=0 // pred_check
    _
  $region19: #{tpu_custom_call.1} parent=0 // pred_check_branch
    %19 = sbr.rel (0) target = $region21
  $region20: #{tpu_custom_call.1} parent=0 // pred_region
    _
  $region21: #{tpu_custom_call.1} parent=0 // pred_fallthru
    _
  %v21 = vld [vmem:[%s0] sm:$0xf]
  %v22 = vld [vmem:[%s1] sm:$0xf]
  %v23 = vld [vmem:[%s1 + $0x4] sm:$0xf]
  %v24 = vld [vmem:[%s1 + $0x8] sm:$0xf]
  %v25 = vld [vmem:[%s1 + $0xc] sm:$0xf]
  %v26 = vld [vmem:[%s2] sm:$0x1]
  %v28 = vlaneseq
  %v29 = vshrl.u32 %v28, 7
  %v30 = vsub.s32 0, %v29
  %v31 = vrot.slane %v26, %v30
  %v37 = vunpack.c.l.b16 %v22
  %v38 = vunpack.c.l.b16 %v23
  %v39 = vunpack.c.l.b16 %v24
  %v40 = vunpack.c.l.b16 %v25
  %v41 = vpack.c.b16 %v38, %v37
  %v42 = vpack.c.b16 %v40, %v39
  %vm45 = vcmask 261120
  %v47 = vsel %vm45, %v21, 0
  %49 = vmatprep.subr.bf16.mxu0 0
  %50 = vmatpush1.bf16.msra.mxu0 %v41
  %51 = vmatprep.subr.bf16.mxu0 0
  %52 = vmatpush1.bf16.msra.mxu0 %v42
  %53 = vmatprep.subr.bf16.mxu0 0
  %54 = vmatpush1.bf16.msra.mxu0 0
  %55 = vmatprep.subr.bf16.mxu0 0
  %56 = vmatpush1.bf16.msra.mxu0 0
  %57 = vmatprep.subr.bf16.mxu0 0
  %58 = vmatpush1.bf16.msra.mxu0 0
  %59 = vmatprep.subr.bf16.mxu0 0
  %60 = vmatpush1.bf16.msra.mxu0 0
  %61 = vmatprep.subr.bf16.mxu0 0
  %62 = vmatpush1.bf16.msra.mxu0 0
  %63 = vmatprep.subr.bf16.mxu0 0
  %64 = vmatpush1.bf16.msra.mxu0 0
  %65 = vmatprep.subr.bf16.mxu0 0
  %66 = vmatpush1.bf16.msra.mxu0 0
  %67 = vmatprep.subr.bf16.mxu0 0
  %68 = vmatpush1.bf16.msra.mxu0 0
  %69 = vmatprep.subr.bf16.mxu0 0
  %70 = vmatpush1.bf16.msra.mxu0 0
  %71 = vmatprep.subr.bf16.mxu0 0
  %72 = vmatpush1.bf16.msra.mxu0 0
  %73 = vmatprep.subr.bf16.mxu0 0
  %74 = vmatpush1.bf16.msra.mxu0 0
  %75 = vmatprep.subr.bf16.mxu0 0
  %76 = vmatpush1.bf16.msra.mxu0 0
  %77 = vmatprep.subr.bf16.mxu0 0
  %78 = vmatpush1.bf16.msra.mxu0 0
  %79 = vmatprep.subr.bf16.mxu0 0
  %80 = vmatpush1.bf16.msra.mxu0 0
  %81 = vmatprep.mubr.bf16.mxu0 0
  %82 = vmatmul.mubr.bf16.gmra.mrb[0].mxu0 %v47
  %v83 = vpop.f32.mrb[0].mxu0
  %v84 = vadd.f32 %v31, %v83
  %v85 = vpop.f32.mrb[0].mxu0
  %v86 = vpop.f32.mrb[0].mxu0
  %v87 = vpop.f32.mrb[0].mxu0
  %88 = vdwg.mxu0
  %v89 = vxor.u32 %v84, 2147483648
  %v90 = vmul.f32 %v89, 1.442695
  %v91 = vpow.pop %v90
  %v92 = vadd.f32 %v91, 1.0
  %v93 = vrcp.pop %v92
  %v94 = vmul.f32 1.0, %v93
  %v95 = vld [vmem:[%s3] sm:$0xff]
  %v96 = vld [vmem:[%s3 + $0x8] sm:$0x3]
  %v97 = vld [vmem:[%s4] sm:$0x1]
  %v99 = vlaneseq
  %v100 = vshrl.u32 %v99, 7
  %v101 = vsub.s32 0, %v100
  %v102 = vrot.slane %v97, %v101
  %vm104 = vcmask 80896
  %v106 = vsel %vm104, %v94, 0
  %vm108 = vcmask 1041408
  %v110 = vsel %vm108, %v96, 0
  %112 = vmatprep.subr.mxu0 0.0
  %113 = vmatpush1.msra.mxu0 %v95
  %114 = vmatprep.subr.mxu0 0.0
  %115 = vmatpush1.msra.mxu0 %v110
  %116 = vmatprep.subr.mxu0 0.0
  %117 = vmatpush1.msra.mxu0 0.0
  %118 = vmatprep.subr.mxu0 0.0
  %119 = vmatpush1.msra.mxu0 0.0
  %120 = vmatprep.subr.mxu0 0.0
  %121 = vmatpush1.msra.mxu0 0.0
  %122 = vmatprep.subr.mxu0 0.0
  %123 = vmatpush1.msra.mxu0 0.0
  %124 = vmatprep.subr.mxu0 0.0
  %125 = vmatpush1.msra.mxu0 0.0
  %126 = vmatprep.subr.mxu0 0.0
  %127 = vmatpush1.msra.mxu0 0.0
  %128 = vmatprep.subr.mxu0 0.0
  %129 = vmatpush1.msra.mxu0 0.0
  %130 = vmatprep.subr.mxu0 0.0
  %131 = vmatpush1.msra.mxu0 0.0
  %132 = vmatprep.subr.mxu0 0.0
  %133 = vmatpush1.msra.mxu0 0.0
  %134 = vmatprep.subr.mxu0 0.0
  %135 = vmatpush1.msra.mxu0 0.0
  %136 = vmatprep.subr.mxu0 0.0
  %137 = vmatpush1.msra.mxu0 0.0
  %138 = vmatprep.subr.mxu0 0.0
  %139 = vmatpush1.msra.mxu0 0.0
  %140 = vmatprep.subr.mxu0 0.0
  %141 = vmatpush1.msra.mxu0 0.0
  %142 = vmatprep.subr.mxu0 0.0
  %143 = vmatpush1.msra.mxu0 0.0
  %144 = vmatprep.subr.mxu0 0.0
  %145 = vmatpush1.msra.mxu0 0.0
  %146 = vmatprep.subr.mxu0 0.0
  %147 = vmatpush1.msra.mxu0 0.0
  %148 = vmatprep.subr.mxu0 0.0
  %149 = vmatpush1.msra.mxu0 0.0
  %150 = vmatprep.subr.mxu0 0.0
  %151 = vmatpush1.msra.mxu0 0.0
  %152 = vmatprep.subr.mxu0 0.0
  %153 = vmatpush1.msra.mxu0 0.0
  %154 = vmatprep.subr.mxu0 0.0
  %155 = vmatpush1.msra.mxu0 0.0
  %156 = vmatprep.subr.mxu0 0.0
  %157 = vmatpush1.msra.mxu0 0.0
  %158 = vmatprep.subr.mxu0 0.0
  %159 = vmatpush1.msra.mxu0 0.0
  %160 = vmatprep.subr.mxu0 0.0
  %161 = vmatpush1.msra.mxu0 0.0
  %162 = vmatprep.subr.mxu0 0.0
  %163 = vmatpush1.msra.mxu0 0.0
  %164 = vmatprep.subr.mxu0 0.0
  %165 = vmatpush1.msra.mxu0 0.0
  %166 = vmatprep.subr.mxu0 0.0
  %167 = vmatpush1.msra.mxu0 0.0
  %168 = vmatprep.subr.mxu0 0.0
  %169 = vmatpush1.msra.mxu0 0.0
  %170 = vmatprep.subr.mxu0 0.0
  %171 = vmatpush1.msra.mxu0 0.0
  %172 = vmatprep.subr.mxu0 0.0
  %173 = vmatpush1.msra.mxu0 0.0
  %174 = vmatprep.subr.mxu0 0.0
  %175 = vmatpush1.msra.mxu0 0.0
  %176 = vmatprep.mubr.f32.mxu0 0.0
  %177 = vmatmul.mubr.f32.gmra.mrb[0].mxu0 %v106
  %v178 = vpop.f32.mrb[0].mxu0
  %v179 = vadd.f32 %v102, %v178
  %v180 = vpop.f32.mrb[0].mxu0
  %181 = vdwg.mxu0
  %v182 = vxor.u32 %v179, 2147483648
  %v183 = vmul.f32 %v182, 1.442695
  %v184 = vpow.pop %v183
  %v185 = vadd.f32 %v184, 1.0
  %v186 = vrcp.pop %v185
  %v187 = vmul.f32 1.0, %v186
  %vm188 = vcmask 31744
  %189 = vst.msk [vmem:[%s5] sm:$0xff] %vm188, %v187
  // Predicated region
  $region22: #{tpu_custom_call.1} parent=0 // pred_check
    _
  $region23: #{tpu_custom_call.1} parent=0 // pred_check_branch
    %191 = sbr.rel (0) target = $region25
  $region24: #{tpu_custom_call.1} parent=0 // pred_region
    _
  $region25: #{tpu_custom_call.1} parent=0 // pred_fallthru
    _
  // Predicated region
  $region26: #{tpu_custom_call.1} parent=0 // pred_check
    _
  $region27: #{tpu_custom_call.1} parent=0 // pred_check_branch
    %193 = sbr.rel (0) target = $region29
  $region28: #{tpu_custom_call.1} parent=0 // pred_region
    _
  $region29: #{tpu_custom_call.1} parent=0 // pred_fallthru
    _

</llo_original>
